<compile_context>
chip_gen: v7x
topology: tpu7x:2x2x1
jax: 0.10.0
libtpu: 0.0.40
codegen_flags: <defaults>
</compile_context>

<pallas_src>
import jax
import jax.numpy as jnp
from jax.experimental import pallas as pl
from jax.experimental.pallas import tpu as pltpu

NEGATIVE_SLOPE = 1.0  # module spec: negative_slope = 1


def _leaky_linear_kernel(x_ref, w_ref, o_ref):
    # x_ref, w_ref, o_ref: (1, 1) float32 refs in SMEM (scalar path).
    # Linear(1, 1, bias=False): z = x @ W^T  ==  x * w  for 1x1 shapes.
    z = x_ref[0, 0] * w_ref[0, 0]
    if NEGATIVE_SLOPE == 1.0:
        # slope == 1  ->  where(z > 0, z, 1*z) is the identity: just write z.
        o_ref[0, 0] = z
    else:
        o_ref[0, 0] = jnp.where(z > 0, z, NEGATIVE_SLOPE * z)


def leaky_linear(x, w):
    # x: (1, 1) float32 input, w: (1, 1) float32 Linear weight -> (1, 1) float32
    # (already (1, 1), so the module's .view(1, 1) is a no-op)
    return pl.pallas_call(
        _leaky_linear_kernel,
        out_shape=jax.ShapeDtypeStruct((1, 1), jnp.float32),
        in_specs=[
            pl.BlockSpec(memory_space=pltpu.SMEM),
            pl.BlockSpec(memory_space=pltpu.SMEM),
        ],
        out_specs=pl.BlockSpec(memory_space=pltpu.SMEM),
    )(x, w)


if __name__ == "__main__":
    key = jax.random.PRNGKey(0)
    kx, kw = jax.random.split(key)

    # input: (N, in_features) = (1, 1) so that .view(1, 1) is valid.
    x = jax.random.normal(kx, (1, 1), dtype=jnp.float32)
    # Linear(1, 1, bias=False) weight: (out_features=1, in_features=1),
    # deterministic init akin to PyTorch's uniform(-1, 1) for in_features=1.
    w = jax.random.uniform(kw, (1, 1), dtype=jnp.float32, minval=-1.0, maxval=1.0)

    out = leaky_linear(x, w)
    jax.block_until_ready(out)

    # reference check in plain JAX
    z_ref = x @ w.T
    ref = jnp.where(z_ref > 0, z_ref, NEGATIVE_SLOPE * z_ref).reshape(1, 1)
    assert out.shape == (1, 1)
    assert jnp.allclose(out, ref, atol=1e-6), (out, ref)
    print("KERNEL_OK")
</pallas_src>

<mosaic_0001>
module attributes {stable_mosaic.version = 11 : i64} {
  func.func @_leaky_linear_kernel(%arg0: memref<1x1xf32, #tpu.memory_space<smem>>, %arg1: memref<1x1xf32, #tpu.memory_space<smem>>, %arg2: memref<1x1xf32, #tpu.memory_space<smem>>) attributes {dimension_semantics = [], scalar_prefetch = 0 : i64, scratch_operands = 0 : i64, tpu.core_type = #tpu.core_type<tc>} {
    %c0 = arith.constant 0 : index
    %c0_0 = arith.constant 0 : index
    %0 = memref.load %arg0[%c0, %c0_0] : memref<1x1xf32, #tpu.memory_space<smem>>
    %c0_1 = arith.constant 0 : index
    %c0_2 = arith.constant 0 : index
    %1 = memref.load %arg1[%c0_1, %c0_2] : memref<1x1xf32, #tpu.memory_space<smem>>
    %2 = arith.mulf %0, %1 : f32
    %c0_3 = arith.constant 0 : index
    %c0_4 = arith.constant 0 : index
    %3 = memref.load %arg2[%c0_3, %c0_4] : memref<1x1xf32, #tpu.memory_space<smem>>
    memref.store %2, %arg2[%c0_3, %c0_4] : memref<1x1xf32, #tpu.memory_space<smem>>
    return
  }
}

</mosaic_0001>

<llo_original>
// kernel: tpu_custom_call.1
$region0: #{tpu_custom_call.1}
  #allocation0 [shape = 'u32[]', space=smem, size = 0x4, offset = 0x4, fixed_abs, tag = 'smem constant byte address 0x4 - core index']
  #allocation1 [shape = 'u32[144,128]{1,0:T(1,128)}', space=vmem, size = 0x12000, scoped, tag = 'internal scratch']
  #allocation2 [shape = 'f32[1,1]{1,0:T(1,128)S(6)}', space=smem, size = 0x200, scoped, tag = 'scoped memory for tpu_custom_call.1']
  #allocation3 [shape = 'f32[1,1]{1,0:T(1,128)S(6)}', space=smem, size = 0x200, scoped, tag = 'scoped memory for tpu_custom_call.1']
  %s0 = inlined_call_operand.<no memory space> [shape: f32[1,1], index: 0, kind: input, shape index: {}]
  %s1 = inlined_call_operand.<no memory space> [shape: f32[1,1], index: 1, kind: input, shape index: {}]
  %s2 = inlined_call_operand.hbm [shape: f32[1,1], index: 2, kind: output, shape index: {}]
  %s3 = sld [smem:[#allocation0]]
  $region18: #{tpu_custom_call.1} parent=0
    _
  %s5 = ssub.s32 1, %s3
  %s6 = scalar_select 0, %s5, %s3
  %7 = sst [smem:[#allocation2]] %s0
  %8 = sst [smem:[#allocation3]] %s1
  $region1: #{tpu_custom_call.1} parent=0
    #allocation4 [shape = 'u8[512]{0}', space=smem, size = 0x200, scoped, tag = 'output window, operand 0, single buffered']
    #allocation5 [shape = 's32[1]{0}', space=sflag, size = 0x4, scoped, tag = 'scoped memory for tpu_custom_call.1']
    %9 = vsyncpa [#allocation5], 0
    // Predicated region
    $region2: #{tpu_custom_call.1} parent=1 // pred_check
      _
    $region3: #{tpu_custom_call.1} parent=1 // pred_check_branch
      %11 = sbr.rel (0) target = $region5
    $region4: #{tpu_custom_call.1} parent=1 // pred_region
      _
    $region5: #{tpu_custom_call.1} parent=1 // pred_fallthru
      _
    // Predicated region
    $region6: #{tpu_custom_call.1} parent=1 // pred_check
      _
    $region7: #{tpu_custom_call.1} parent=1 // pred_check_branch
      %13 = sbr.rel (0) target = $region9
    $region8: #{tpu_custom_call.1} parent=1 // pred_region
      _
    $region9: #{tpu_custom_call.1} parent=1 // pred_fallthru
      _
    %s14 = sld [smem:[#allocation2]]
    %s15 = sld [smem:[#allocation3]]
    %s16 = smul.f32 %s14, %s15
    %s17 = scalar_lea.smem [#allocation4], 0
    %18 = sst [smem:[%s17]] %s16
    // Predicated region
    $region10: #{tpu_custom_call.1} parent=1 // pred_check
      _
    $region11: #{tpu_custom_call.1} parent=1 // pred_check_branch
      %20 = sbr.rel (0) target = $region13
    $region12: #{tpu_custom_call.1} parent=1 // pred_region
      %s22 = ssub.s32 16, 16
      %23 = vsyncadd [#allocation5], %s22
      %26 = dma.smem_to_hbm [#allocation4], 16, %s2, [#allocation5]
    $region13: #{tpu_custom_call.1} parent=1 // pred_fallthru
      _
    // Predicated region
    $region14: #{tpu_custom_call.1} parent=1 // pred_check
      _
    $region15: #{tpu_custom_call.1} parent=1 // pred_check_branch
      %28 = sbr.rel (0) target = $region17
    $region16: #{tpu_custom_call.1} parent=1 // pred_region
      %29 = dma.done [#allocation5], 16
    $region17: #{tpu_custom_call.1} parent=1 // pred_fallthru
      _
    %30 = sfence
    %31 = vsyncpa [#allocation5], 1

</llo_original>
